<compile_context>
chip_gen: v7x
topology: tpu7x:2x2x1
jax: 0.10.0
libtpu: 0.0.40
codegen_flags: <defaults>
</compile_context>

<pallas_src>
import jax
import jax.numpy as jnp
from jax.experimental import pallas as pl
from jax.experimental.pallas import tpu as pltpu


# ----------------------------- Pallas kernel --------------------------------
def _policy_net_kernel(x_ref, g_ref, temp_ref,
                       w1_ref, b1_ref, w2_ref, b2_ref, w3_ref, b3_ref,
                       logits_ref, hard_ref):
    x = x_ref[...]                                                     # (B, Din)

    # Linear(in_dim, 256) + LeakyReLU(0.1)
    h = jnp.dot(x, w1_ref[...], preferred_element_type=jnp.float32) + b1_ref[...]
    h = jnp.where(h >= 0, h, 0.1 * h)

    # BatchNorm1d(256) (eval mode) folded into w2/b2 in the wrapper.
    # Linear(256, 32) + LeakyReLU(0.1)
    h = jnp.dot(h, w2_ref[...], preferred_element_type=jnp.float32) + b2_ref[...]
    h = jnp.where(h >= 0, h, 0.1 * h)

    # BatchNorm1d(32) (eval mode) folded into w3/b3 in the wrapper.
    # Linear(32, 2)
    logits = jnp.dot(h, w3_ref[...], preferred_element_type=jnp.float32) + b3_ref[...]
    logits_ref[...] = logits                                           # (B, 2)

    # Hard Gumbel-softmax (straight-through): forward value is the one-hot of
    # argmax((logits + gumbel_noise) / tau) with first-index tie-break.
    inv_tau = 1.0 / temp_ref[0, 0]
    z = (logits + g_ref[...]) * inv_tau
    ncls = z.shape[-1]
    m = jnp.max(z, axis=-1, keepdims=True)
    col = jax.lax.broadcasted_iota(jnp.int32, z.shape, 1)
    cand = jnp.where(z >= m, col, ncls)            # indices achieving the max
    idx = jnp.min(cand, axis=-1, keepdims=True)    # first such index
    hard_ref[...] = (col == idx).astype(jnp.float32)


# ------------------------------- wrapper -------------------------------------
def policy_net_forward(x, temp, gumbel_noise, params, eps=1e-5):
    """Mirrors PolicyNet.forward (eval-mode BatchNorm).  Returns (logits, hard_mask)."""
    B, Din = x.shape
    H1 = params["w1"].shape[1]      # 256
    H2 = params["w2"].shape[1]      # 32
    C = params["w3"].shape[1]       # 2

    # Fold eval-mode BatchNorm1d (running stats) into the following Linear.
    s1 = params["bn1_gamma"] / jnp.sqrt(params["bn1_var"] + eps)
    t1 = params["bn1_beta"] - params["bn1_mean"] * s1
    w2 = s1[:, None] * params["w2"]
    b2 = (t1 @ params["w2"] + params["b2"])[None, :]

    s2 = params["bn2_gamma"] / jnp.sqrt(params["bn2_var"] + eps)
    t2 = params["bn2_beta"] - params["bn2_mean"] * s2
    w3 = s2[:, None] * params["w3"]
    b3 = (t2 @ params["w3"] + params["b3"])[None, :]

    b1 = params["b1"][None, :]
    temp_arr = jnp.full((1, 1), temp, jnp.float32)

    vmem = lambda: pl.BlockSpec(memory_space=pltpu.MemorySpace.VMEM)
    smem = lambda: pl.BlockSpec(memory_space=pltpu.MemorySpace.SMEM)

    flops = 2 * B * (Din * H1 + H1 * H2 + H2 * C)
    bytes_accessed = 4 * (x.size + gumbel_noise.size + params["w1"].size + H1
                          + w2.size + H2 + w3.size + C + 2 * B * C + 1)

    logits, hard = pl.pallas_call(
        _policy_net_kernel,
        out_shape=(jax.ShapeDtypeStruct((B, C), jnp.float32),
                   jax.ShapeDtypeStruct((B, C), jnp.float32)),
        in_specs=[vmem(), vmem(), smem(),
                  vmem(), vmem(), vmem(), vmem(), vmem(), vmem()],
        out_specs=(vmem(), vmem()),
        cost_estimate=pl.CostEstimate(flops=flops, transcendentals=0,
                                      bytes_accessed=bytes_accessed),
    )(x, gumbel_noise, temp_arr,
      params["w1"], b1, w2, b2, w3, b3)
    return logits, hard


# --------------------------- pure-JAX reference -------------------------------
def policy_net_reference(x, temp, gumbel_noise, params, eps=1e-5):
    h = x @ params["w1"] + params["b1"]
    h = jnp.where(h >= 0, h, 0.1 * h)
    h = ((h - params["bn1_mean"]) / jnp.sqrt(params["bn1_var"] + eps)
         * params["bn1_gamma"] + params["bn1_beta"])
    h = h @ params["w2"] + params["b2"]
    h = jnp.where(h >= 0, h, 0.1 * h)
    h = ((h - params["bn2_mean"]) / jnp.sqrt(params["bn2_var"] + eps)
         * params["bn2_gamma"] + params["bn2_beta"])
    logits = h @ params["w3"] + params["b3"]

    z = (logits + gumbel_noise) / temp
    hard = jax.nn.one_hot(jnp.argmax(z, axis=-1), z.shape[-1], dtype=jnp.float32)
    return logits, hard


# --------------------------------- main ---------------------------------------
if __name__ == "__main__":
    # opt: rnn_hidden_size=32, i_f_len=32  ->  in_dim = 64
    B, Din = 2, 64
    H1, H2, C = 256, 32, 2
    temp = 0.7

    key = jax.random.PRNGKey(0)
    ks = jax.random.split(key, 20)
    s = 0.1
    params = {
        "w1": s * jax.random.normal(ks[0], (Din, H1), jnp.float32),
        "b1": s * jax.random.normal(ks[1], (H1,), jnp.float32),
        "bn1_gamma": 1.0 + s * jax.random.normal(ks[2], (H1,), jnp.float32),
        "bn1_beta": s * jax.random.normal(ks[3], (H1,), jnp.float32),
        "bn1_mean": s * jax.random.normal(ks[4], (H1,), jnp.float32),
        "bn1_var": jax.random.uniform(ks[5], (H1,), jnp.float32, 0.5, 1.5),
        "w2": s * jax.random.normal(ks[6], (H1, H2), jnp.float32),
        "b2": s * jax.random.normal(ks[7], (H2,), jnp.float32),
        "bn2_gamma": 1.0 + s * jax.random.normal(ks[8], (H2,), jnp.float32),
        "bn2_beta": s * jax.random.normal(ks[9], (H2,), jnp.float32),
        "bn2_mean": s * jax.random.normal(ks[10], (H2,), jnp.float32),
        "bn2_var": jax.random.uniform(ks[11], (H2,), jnp.float32, 0.5, 1.5),
        "w3": s * jax.random.normal(ks[12], (H2, C), jnp.float32),
        "b3": s * jax.random.normal(ks[13], (C,), jnp.float32),
    }

    x = jax.random.normal(ks[14], (B, Din), jnp.float32)
    # Gumbel(0,1) noise sampled exactly like PyTorch: -log(Exponential(1))
    gumbel_noise = -jnp.log(jax.random.exponential(ks[15], (B, C), jnp.float32))

    logits, hard_mask = policy_net_forward(x, temp, gumbel_noise, params)
    jax.block_until_ready((logits, hard_mask))

    # correctness check against pure-JAX reference
    logits_r, hard_r = policy_net_reference(x, temp, gumbel_noise, params)
    assert jnp.allclose(logits, logits_r, atol=2e-4, rtol=2e-4)
    assert jnp.allclose(hard_mask, hard_r, atol=1e-6)
    # hard mask must be a valid one-hot over the 2 classes
    assert jnp.allclose(hard_mask.sum(-1), 1.0)

    print("KERNEL_OK")
</pallas_src>

<mosaic_0001>
module attributes {stable_mosaic.version = 11 : i64} {
  func.func @_policy_net_kernel(%arg0: memref<2x64xf32, #tpu.memory_space<vmem>>, %arg1: memref<2x2xf32, #tpu.memory_space<vmem>>, %arg2: memref<1x1xf32, #tpu.memory_space<smem>>, %arg3: memref<64x256xf32, #tpu.memory_space<vmem>>, %arg4: memref<1x256xf32, #tpu.memory_space<vmem>>, %arg5: memref<256x32xf32, #tpu.memory_space<vmem>>, %arg6: memref<1x32xf32, #tpu.memory_space<vmem>>, %arg7: memref<32x2xf32, #tpu.memory_space<vmem>>, %arg8: memref<1x2xf32, #tpu.memory_space<vmem>>, %arg9: memref<2x2xf32, #tpu.memory_space<vmem>>, %arg10: memref<2x2xf32, #tpu.memory_space<vmem>>) attributes {dimension_semantics = [], scalar_prefetch = 0 : i64, scratch_operands = 0 : i64, tpu.core_type = #tpu.core_type<tc>} {
    %c0 = arith.constant 0 : index
    %c0_0 = arith.constant 0 : index
    %0 = vector.load %arg0[%c0, %c0_0] : memref<2x64xf32, #tpu.memory_space<vmem>>, vector<2x64xf32>
    %c0_1 = arith.constant 0 : index
    %c0_2 = arith.constant 0 : index
    %1 = vector.load %arg3[%c0_1, %c0_2] : memref<64x256xf32, #tpu.memory_space<vmem>>, vector<64x256xf32>
    %cst = arith.constant dense<0.000000e+00> : vector<2x256xf32>
    %2 = tpu.matmul %0, %1, %cst {dimension_numbers = #tpu.dot_dimension_numbers<[1], [0], [0], [1], [0, 0, 1, 1], [], []>} : vector<2x64xf32>, vector<64x256xf32>, vector<2x256xf32> -> vector<2x256xf32>
    %c0_3 = arith.constant 0 : index
    %c0_4 = arith.constant 0 : index
    %3 = vector.load %arg4[%c0_3, %c0_4] : memref<1x256xf32, #tpu.memory_space<vmem>>, vector<1x256xf32>
    %4 = vector.broadcast %3 : vector<1x256xf32> to vector<2x256xf32>
    %5 = arith.addf %2, %4 : vector<2x256xf32>
    %cst_5 = arith.constant 0.000000e+00 : f32
    %6 = vector.broadcast %cst_5 : f32 to vector<2x256xf32>
    %7 = arith.cmpf oge, %5, %6 : vector<2x256xf32>
    %cst_6 = arith.constant 1.000000e-01 : f32
    %8 = vector.broadcast %cst_6 : f32 to vector<2x256xf32>
    %9 = arith.mulf %8, %5 : vector<2x256xf32>
    %10 = arith.select %7, %5, %9 : vector<2x256xi1>, vector<2x256xf32>
    %c0_7 = arith.constant 0 : index
    %c0_8 = arith.constant 0 : index
    %11 = vector.load %arg5[%c0_7, %c0_8] : memref<256x32xf32, #tpu.memory_space<vmem>>, vector<256x32xf32>
    %cst_9 = arith.constant dense<0.000000e+00> : vector<2x32xf32>
    %12 = tpu.matmul %10, %11, %cst_9 {dimension_numbers = #tpu.dot_dimension_numbers<[1], [0], [0], [1], [0, 0, 1, 1], [], []>} : vector<2x256xf32>, vector<256x32xf32>, vector<2x32xf32> -> vector<2x32xf32>
    %c0_10 = arith.constant 0 : index
    %c0_11 = arith.constant 0 : index
    %13 = vector.load %arg6[%c0_10, %c0_11] : memref<1x32xf32, #tpu.memory_space<vmem>>, vector<1x32xf32>
    %14 = vector.broadcast %13 : vector<1x32xf32> to vector<2x32xf32>
    %15 = arith.addf %12, %14 : vector<2x32xf32>
    %cst_12 = arith.constant 0.000000e+00 : f32
    %16 = vector.broadcast %cst_12 : f32 to vector<2x32xf32>
    %17 = arith.cmpf oge, %15, %16 : vector<2x32xf32>
    %cst_13 = arith.constant 1.000000e-01 : f32
    %18 = vector.broadcast %cst_13 : f32 to vector<2x32xf32>
    %19 = arith.mulf %18, %15 : vector<2x32xf32>
    %20 = arith.select %17, %15, %19 : vector<2x32xi1>, vector<2x32xf32>
    %c0_14 = arith.constant 0 : index
    %c0_15 = arith.constant 0 : index
    %21 = vector.load %arg7[%c0_14, %c0_15] : memref<32x2xf32, #tpu.memory_space<vmem>>, vector<32x2xf32>
    %cst_16 = arith.constant dense<0.000000e+00> : vector<2x2xf32>
    %22 = tpu.matmul %20, %21, %cst_16 {dimension_numbers = #tpu.dot_dimension_numbers<[1], [0], [0], [1], [0, 0, 1, 1], [], []>} : vector<2x32xf32>, vector<32x2xf32>, vector<2x2xf32> -> vector<2x2xf32>
    %c0_17 = arith.constant 0 : index
    %c0_18 = arith.constant 0 : index
    %23 = vector.load %arg8[%c0_17, %c0_18] : memref<1x2xf32, #tpu.memory_space<vmem>>, vector<1x2xf32>
    %24 = vector.broadcast %23 : vector<1x2xf32> to vector<2x2xf32>
    %25 = arith.addf %22, %24 : vector<2x2xf32>
    %c0_19 = arith.constant 0 : index
    %c0_20 = arith.constant 0 : index
    %26 = vector.load %arg9[%c0_19, %c0_20] : memref<2x2xf32, #tpu.memory_space<vmem>>, vector<2x2xf32>
    tpu.vector_store %arg9[%c0_19, %c0_20], %25 {strides = array<i32>} : memref<2x2xf32, #tpu.memory_space<vmem>>, vector<2x2xf32>,
    %c0_21 = arith.constant 0 : index
    %c0_22 = arith.constant 0 : index
    %27 = memref.load %arg2[%c0_21, %c0_22] : memref<1x1xf32, #tpu.memory_space<smem>>
    %cst_23 = arith.constant 1.000000e+00 : f32
    %28 = arith.divf %cst_23, %27 : f32
    %c0_24 = arith.constant 0 : index
    %c0_25 = arith.constant 0 : index
    %29 = vector.load %arg1[%c0_24, %c0_25] : memref<2x2xf32, #tpu.memory_space<vmem>>, vector<2x2xf32>
    %30 = arith.addf %25, %29 : vector<2x2xf32>
    %31 = vector.broadcast %28 : f32 to vector<2x2xf32>
    %32 = arith.mulf %30, %31 : vector<2x2xf32>
    %cst_26 = arith.constant dense<0xFF800000> : vector<2xf32>
    %33 = vector.multi_reduction <maximumf>, %32, %cst_26 [1] : vector<2x2xf32> to vector<2xf32>
    %34 = vector.shape_cast %33 : vector<2xf32> to vector<2x1xf32>
    %35 = tpu.iota {dimensions = array<i32: 1>} : vector<2x2xi32>
    %36 = vector.broadcast %34 : vector<2x1xf32> to vector<2x2xf32>
    %37 = arith.cmpf oge, %32, %36 : vector<2x2xf32>
    %c2_i32 = arith.constant 2 : i32
    %38 = vector.broadcast %c2_i32 : i32 to vector<2x2xi32>
    %39 = arith.select %37, %35, %38 : vector<2x2xi1>, vector<2x2xi32>
    %cst_27 = arith.constant dense<2147483647> : vector<2xi32>
    %40 = vector.multi_reduction <minsi>, %39, %cst_27 [1] : vector<2x2xi32> to vector<2xi32>
    %41 = vector.shape_cast %40 : vector<2xi32> to vector<2x1xi32>
    %42 = vector.broadcast %41 : vector<2x1xi32> to vector<2x2xi32>
    %43 = arith.cmpi eq, %35, %42 : vector<2x2xi32>
    %44 = arith.extui %43 : vector<2x2xi1> to vector<2x2xi32>
    %45 = arith.sitofp %44 : vector<2x2xi32> to vector<2x2xf32>
    %c0_28 = arith.constant 0 : index
    %c0_29 = arith.constant 0 : index
    %46 = vector.load %arg10[%c0_28, %c0_29] : memref<2x2xf32, #tpu.memory_space<vmem>>, vector<2x2xf32>
    tpu.vector_store %arg10[%c0_28, %c0_29], %45 {strides = array<i32>} : memref<2x2xf32, #tpu.memory_space<vmem>>, vector<2x2xf32>,
    return
  }
}

</mosaic_0001>

<llo_original>
// kernel: tpu_custom_call.1
$region0: #{tpu_custom_call.1}
  #allocation0 [shape = 'u32[]', space=smem, size = 0x4, offset = 0x4, fixed_abs, tag = 'smem constant byte address 0x4 - core index']
  #allocation1 [shape = 'u32[144,128]{1,0:T(1,128)}', space=vmem, size = 0x12000, scoped, tag = 'internal scratch']
  #allocation2 [shape = 'f32[1,1]{1,0:T(1,128)S(6)}', space=smem, size = 0x200, scoped, tag = 'scoped memory for tpu_custom_call.1']
  %s0 = inlined_call_operand.vmem [shape: f32[2,64], index: 0, kind: input, shape index: {}]
  %s1 = inlined_call_operand.vmem [shape: f32[2,2], index: 1, kind: input, shape index: {}]
  %s2 = inlined_call_operand.<no memory space> [shape: f32[1,1], index: 2, kind: input, shape index: {}]
  %s3 = inlined_call_operand.vmem [shape: f32[64,256], index: 3, kind: input, shape index: {}]
  %s4 = inlined_call_operand.vmem [shape: f32[1,256], index: 4, kind: input, shape index: {}]
  %s5 = inlined_call_operand.vmem [shape: f32[256,32], index: 5, kind: input, shape index: {}]
  %s6 = inlined_call_operand.vmem [shape: f32[1,32], index: 6, kind: input, shape index: {}]
  %s7 = inlined_call_operand.vmem [shape: f32[32,2], index: 7, kind: input, shape index: {}]
  %s8 = inlined_call_operand.vmem [shape: f32[1,2], index: 8, kind: input, shape index: {}]
  %s9 = inlined_call_operand.hbm [shape: f32[2,2], index: 9, kind: output, shape index: {0}]
  %s10 = inlined_call_operand.hbm [shape: f32[2,2], index: 10, kind: output, shape index: {1}]
  %11 = xla_tuple %s9, %s10
  %s12 = sld [smem:[#allocation0]]
  $region54: #{tpu_custom_call.1} parent=0
    _
  %s14 = ssub.s32 1, %s12
  %s15 = scalar_select 0, %s14, %s12
  %16 = sst [smem:[#allocation2]] %s2
  $region1: #{tpu_custom_call.1} parent=0
    #allocation3 [shape = 'u8[1024]{0}', space=vmem, size = 0x400, scoped, tag = 'output window, operand 0, single buffered']
    #allocation4 [shape = 's32[1]{0}', space=sflag, size = 0x4, scoped, tag = 'scoped memory for tpu_custom_call.1']
    #allocation5 [shape = 'u8[1024]{0}', space=vmem, size = 0x400, scoped, tag = 'output window, operand 1, single buffered']
    #allocation6 [shape = 's32[1]{0}', space=sflag, size = 0x4, scoped, tag = 'scoped memory for tpu_custom_call.1']
    %17 = vsyncpa [#allocation4], 0
    %18 = vsyncpa [#allocation6], 0
    // Predicated region
    $region2: #{tpu_custom_call.1} parent=1 // pred_check
      _
    $region3: #{tpu_custom_call.1} parent=1 // pred_check_branch
      %20 = sbr.rel (0) target = $region5
    $region4: #{tpu_custom_call.1} parent=1 // pred_region
      _
    $region5: #{tpu_custom_call.1} parent=1 // pred_fallthru
      _
    // Predicated region
    $region6: #{tpu_custom_call.1} parent=1 // pred_check
      _
    $region7: #{tpu_custom_call.1} parent=1 // pred_check_branch
      %22 = sbr.rel (0) target = $region9
    $region8: #{tpu_custom_call.1} parent=1 // pred_region
      _
    $region9: #{tpu_custom_call.1} parent=1 // pred_fallthru
      _
    // Predicated region
    $region10: #{tpu_custom_call.1} parent=1 // pred_check
      _
    $region11: #{tpu_custom_call.1} parent=1 // pred_check_branch
      %24 = sbr.rel (0) target = $region13
    $region12: #{tpu_custom_call.1} parent=1 // pred_region
      _
    $region13: #{tpu_custom_call.1} parent=1 // pred_fallthru
      _
    // Predicated region
    $region14: #{tpu_custom_call.1} parent=1 // pred_check
      _
    $region15: #{tpu_custom_call.1} parent=1 // pred_check_branch
      %26 = sbr.rel (0) target = $region17
    $region16: #{tpu_custom_call.1} parent=1 // pred_region
      _
    $region17: #{tpu_custom_call.1} parent=1 // pred_fallthru
      _
    // Predicated region
    $region18: #{tpu_custom_call.1} parent=1 // pred_check
      _
    $region19: #{tpu_custom_call.1} parent=1 // pred_check_branch
      %28 = sbr.rel (0) target = $region21
    $region20: #{tpu_custom_call.1} parent=1 // pred_region
      _
    $region21: #{tpu_custom_call.1} parent=1 // pred_fallthru
      _
    // Predicated region
    $region22: #{tpu_custom_call.1} parent=1 // pred_check
      _
    $region23: #{tpu_custom_call.1} parent=1 // pred_check_branch
      %30 = sbr.rel (0) target = $region25
    $region24: #{tpu_custom_call.1} parent=1 // pred_region
      _
    $region25: #{tpu_custom_call.1} parent=1 // pred_fallthru
      _
    // Predicated region
    $region26: #{tpu_custom_call.1} parent=1 // pred_check
      _
    $region27: #{tpu_custom_call.1} parent=1 // pred_check_branch
      %32 = sbr.rel (0) target = $region29
    $region28: #{tpu_custom_call.1} parent=1 // pred_region
      _
    $region29: #{tpu_custom_call.1} parent=1 // pred_fallthru
      _
    // Predicated region
    $region30: #{tpu_custom_call.1} parent=1 // pred_check
      _
    $region31: #{tpu_custom_call.1} parent=1 // pred_check_branch
      %34 = sbr.rel (0) target = $region33
    $region32: #{tpu_custom_call.1} parent=1 // pred_region
      _
    $region33: #{tpu_custom_call.1} parent=1 // pred_fallthru
      _
    // Predicated region
    $region34: #{tpu_custom_call.1} parent=1 // pred_check
      _
    $region35: #{tpu_custom_call.1} parent=1 // pred_check_branch
      %36 = sbr.rel (0) target = $region37
    $region36: #{tpu_custom_call.1} parent=1 // pred_region
      _
    $region37: #{tpu_custom_call.1} parent=1 // pred_fallthru
      _
    %v37 = vld [vmem:[%s0] sm:$0x3]
    %v38 = vld [vmem:[%s3] sm:$0xff]
    %v39 = vld [vmem:[%s3 + $0x8] sm:$0xff]
    %v40 = vld [vmem:[%s3 + $0x10] sm:$0xff]
    %v41 = vld [vmem:[%s3 + $0x18] sm:$0xff]
    %v42 = vld [vmem:[%s3 + $0x20] sm:$0xff]
    %v43 = vld [vmem:[%s3 + $0x28] sm:$0xff]
    %v44 = vld [vmem:[%s3 + $0x30] sm:$0xff]
    %v45 = vld [vmem:[%s3 + $0x38] sm:$0xff]
    %v46 = vld [vmem:[%s3 + $0x40] sm:$0xff]
    %v47 = vld [vmem:[%s3 + $0x48] sm:$0xff]
    %v48 = vld [vmem:[%s3 + $0x50] sm:$0xff]
    %v49 = vld [vmem:[%s3 + $0x58] sm:$0xff]
    %v50 = vld [vmem:[%s3 + $0x60] sm:$0xff]
    %v51 = vld [vmem:[%s3 + $0x68] sm:$0xff]
    %v52 = vld [vmem:[%s3 + $0x70] sm:$0xff]
    %v53 = vld [vmem:[%s3 + $0x78] sm:$0xff]
    %v54 = vld [vmem:[%s4] sm:$0x3]
    %v56 = vlaneseq
    %v57 = vshrl.u32 %v56, 7
    %v58 = vsub.s32 0, %v57
    %v59 = vrot.slane %v54, %v58
    %v60 = vlaneseq
    %v61 = vshrl.u32 %v60, 7
    %v62 = vsub.s32 1, %v61
    %v63 = vrot.slane %v54, %v62
    %vm66 = vcmask 523264
    %v68 = vsel %vm66, %v37, 0
    %70 = vmatprep.subr.mxu0 %v39
    %71 = vmatpush1.msra.mxu0 %v38
    %72 = vmatprep.subr.mxu0 %v41
    %73 = vmatpush1.msra.mxu0 %v40
    %74 = vmatprep.subr.mxu0 %v43
    %75 = vmatpush1.msra.mxu0 %v42
    %76 = vmatprep.subr.mxu0 %v45
    %77 = vmatpush1.msra.mxu0 %v44
    %78 = vmatprep.subr.mxu0 %v47
    %79 = vmatpush1.msra.mxu0 %v46
    %80 = vmatprep.subr.mxu0 %v49
    %81 = vmatpush1.msra.mxu0 %v48
    %82 = vmatprep.subr.mxu0 %v51
    %83 = vmatpush1.msra.mxu0 %v50
    %84 = vmatprep.subr.mxu0 %v53
    %85 = vmatpush1.msra.mxu0 %v52
    %86 = vmatprep.subr.mxu0 0.0
    %87 = vmatpush1.msra.mxu0 0.0
    %88 = vmatprep.subr.mxu0 0.0
    %89 = vmatpush1.msra.mxu0 0.0
    %90 = vmatprep.subr.mxu0 0.0
    %91 = vmatpush1.msra.mxu0 0.0
    %92 = vmatprep.subr.mxu0 0.0
    %93 = vmatpush1.msra.mxu0 0.0
    %94 = vmatprep.subr.mxu0 0.0
    %95 = vmatpush1.msra.mxu0 0.0
    %96 = vmatprep.subr.mxu0 0.0
    %97 = vmatpush1.msra.mxu0 0.0
    %98 = vmatprep.subr.mxu0 0.0
    %99 = vmatpush1.msra.mxu0 0.0
    %100 = vmatprep.subr.mxu0 0.0
    %101 = vmatpush1.msra.mxu0 0.0
    %102 = vmatprep.subr.mxu0 0.0
    %103 = vmatpush1.msra.mxu0 0.0
    %104 = vmatprep.subr.mxu0 0.0
    %105 = vmatpush1.msra.mxu0 0.0
    %106 = vmatprep.subr.mxu0 0.0
    %107 = vmatpush1.msra.mxu0 0.0
    %108 = vmatprep.subr.mxu0 0.0
    %109 = vmatpush1.msra.mxu0 0.0
    %110 = vmatprep.subr.mxu0 0.0
    %111 = vmatpush1.msra.mxu0 0.0
    %112 = vmatprep.subr.mxu0 0.0
    %113 = vmatpush1.msra.mxu0 0.0
    %114 = vmatprep.subr.mxu0 0.0
    %115 = vmatpush1.msra.mxu0 0.0
    %116 = vmatprep.subr.mxu0 0.0
    %117 = vmatpush1.msra.mxu0 0.0
    %118 = vmatprep.subr.mxu0 0.0
    %119 = vmatpush1.msra.mxu0 0.0
    %120 = vmatprep.subr.mxu0 0.0
    %121 = vmatpush1.msra.mxu0 0.0
    %122 = vmatprep.subr.mxu0 0.0
    %123 = vmatpush1.msra.mxu0 0.0
    %124 = vmatprep.subr.mxu0 0.0
    %125 = vmatpush1.msra.mxu0 0.0
    %126 = vmatprep.subr.mxu0 0.0
    %127 = vmatpush1.msra.mxu0 0.0
    %128 = vmatprep.subr.mxu0 0.0
    %129 = vmatpush1.msra.mxu0 0.0
    %130 = vmatprep.subr.mxu0 0.0
    %131 = vmatpush1.msra.mxu0 0.0
    %132 = vmatprep.subr.mxu0 0.0
    %133 = vmatpush1.msra.mxu0 0.0
    %134 = vmatprep.mubr.f32.mxu0 0.0
    %135 = vmatmul.mubr.f32.gmra.mrb[0].mxu0 %v68
    %v136 = vpop.f32.mrb[0].mxu0
    %v137 = vadd.f32 %v59, %v136
    %v138 = vpop.f32.mrb[0].mxu0
    %v139 = vadd.f32 %v63, %v138
    %140 = vdwg.mxu0
    %vm141 = vcmp.ge.f32.partialorder %v137, 0.0
    %vm142 = vcmp.ge.f32.partialorder %v139, 0.0
    %v143 = vmul.f32 %v137, 0.1
    %v144 = vmul.f32 %v139, 0.1
    %v145 = vsel %vm141, %v137, %v143
    %v146 = vsel %vm142, %v139, %v144
    %v147 = vld [vmem:[%s5] sm:$0xff]
    %v148 = vld [vmem:[%s5 + $0x8] sm:$0xff]
    %v149 = vld [vmem:[%s5 + $0x10] sm:$0xff]
    %v150 = vld [vmem:[%s5 + $0x18] sm:$0xff]
    %v151 = vld [vmem:[%s5 + $0x20] sm:$0xff]
    %v152 = vld [vmem:[%s5 + $0x28] sm:$0xff]
    %v153 = vld [vmem:[%s5 + $0x30] sm:$0xff]
    %v154 = vld [vmem:[%s5 + $0x38] sm:$0xff]
    %v155 = vld [vmem:[%s5 + $0x40] sm:$0xff]
    %v156 = vld [vmem:[%s5 + $0x48] sm:$0xff]
    %v157 = vld [vmem:[%s5 + $0x50] sm:$0xff]
    %v158 = vld [vmem:[%s5 + $0x58] sm:$0xff]
    %v159 = vld [vmem:[%s5 + $0x60] sm:$0xff]
    %v160 = vld [vmem:[%s5 + $0x68] sm:$0xff]
    %v161 = vld [vmem:[%s5 + $0x70] sm:$0xff]
    %v162 = vld [vmem:[%s5 + $0x78] sm:$0xff]
    %v163 = vld [vmem:[%s5 + $0x80] sm:$0xff]
    %v164 = vld [vmem:[%s5 + $0x88] sm:$0xff]
    %v165 = vld [vmem:[%s5 + $0x90] sm:$0xff]
    %v166 = vld [vmem:[%s5 + $0x98] sm:$0xff]
    %v167 = vld [vmem:[%s5 + $0xa0] sm:$0xff]
    %v168 = vld [vmem:[%s5 + $0xa8] sm:$0xff]
    %v169 = vld [vmem:[%s5 + $0xb0] sm:$0xff]
    %v170 = vld [vmem:[%s5 + $0xb8] sm:$0xff]
    %v171 = vld [vmem:[%s5 + $0xc0] sm:$0xff]
    %v172 = vld [vmem:[%s5 + $0xc8] sm:$0xff]
    %v173 = vld [vmem:[%s5 + $0xd0] sm:$0xff]
    %v174 = vld [vmem:[%s5 + $0xd8] sm:$0xff]
    %v175 = vld [vmem:[%s5 + $0xe0] sm:$0xff]
    %v176 = vld [vmem:[%s5 + $0xe8] sm:$0xff]
    %v177 = vld [vmem:[%s5 + $0xf0] sm:$0xff]
    %v178 = vld [vmem:[%s5 + $0xf8] sm:$0xff]
    %v179 = vld [vmem:[%s6] sm:$0x1]
    %v181 = vlaneseq
    %v182 = vshrl.u32 %v181, 7
    %v183 = vsub.s32 0, %v182
    %v184 = vrot.slane %v179, %v183
    %186 = vmatprep.subr.mxu0 0.0
    %187 = vmatpush1.msra.mxu0 %v147
    %188 = vmatprep.subr.mxu0 0.0
    %189 = vmatpush1.msra.mxu0 %v148
    %190 = vmatprep.subr.mxu0 0.0
    %191 = vmatpush1.msra.mxu0 %v149
    %192 = vmatprep.subr.mxu0 0.0
    %193 = vmatpush1.msra.mxu0 %v150
    %194 = vmatprep.subr.mxu0 0.0
    %195 = vmatpush1.msra.mxu0 %v151
    %196 = vmatprep.subr.mxu0 0.0
    %197 = vmatpush1.msra.mxu0 %v152
    %198 = vmatprep.subr.mxu0 0.0
    %199 = vmatpush1.msra.mxu0 %v153
    %200 = vmatprep.subr.mxu0 0.0
    %201 = vmatpush1.msra.mxu0 %v154
    %202 = vmatprep.subr.mxu0 0.0
    %203 = vmatpush1.msra.mxu0 %v155
    %204 = vmatprep.subr.mxu0 0.0
    %205 = vmatpush1.msra.mxu0 %v156
    %206 = vmatprep.subr.mxu0 0.0
    %207 = vmatpush1.msra.mxu0 %v157
    %208 = vmatprep.subr.mxu0 0.0
    %209 = vmatpush1.msra.mxu0 %v158
    %210 = vmatprep.subr.mxu0 0.0
    %211 = vmatpush1.msra.mxu0 %v159
    %212 = vmatprep.subr.mxu0 0.0
    %213 = vmatpush1.msra.mxu0 %v160
    %214 = vmatprep.subr.mxu0 0.0
    %215 = vmatpush1.msra.mxu0 %v161
    %216 = vmatprep.subr.mxu0 0.0
    %217 = vmatpush1.msra.mxu0 %v162
    %218 = vmatprep.subr.mxu0 0.0
    %219 = vmatpush1.msra.mxu0 %v163
    %220 = vmatprep.subr.mxu0 0.0
    %221 = vmatpush1.msra.mxu0 %v164
    %222 = vmatprep.subr.mxu0 0.0
    %223 = vmatpush1.msra.mxu0 %v165
    %224 = vmatprep.subr.mxu0 0.0
    %225 = vmatpush1.msra.mxu0 %v166
    %226 = vmatprep.subr.mxu0 0.0
    %227 = vmatpush1.msra.mxu0 %v167
    %228 = vmatprep.subr.mxu0 0.0
    %229 = vmatpush1.msra.mxu0 %v168
    %230 = vmatprep.subr.mxu0 0.0
    %231 = vmatpush1.msra.mxu0 %v169
    %232 = vmatprep.subr.mxu0 0.0
    %233 = vmatpush1.msra.mxu0 %v170
    %234 = vmatprep.subr.mxu0 0.0
    %235 = vmatpush1.msra.mxu0 %v171
    %236 = vmatprep.subr.mxu0 0.0
    %237 = vmatpush1.msra.mxu0 %v172
    %238 = vmatprep.subr.mxu0 0.0
    %239 = vmatpush1.msra.mxu0 %v173
    %240 = vmatprep.subr.mxu0 0.0
    %241 = vmatpush1.msra.mxu0 %v174
    %242 = vmatprep.subr.mxu0 0.0
    %243 = vmatpush1.msra.mxu0 %v175
    %244 = vmatprep.subr.mxu0 0.0
    %245 = vmatpush1.msra.mxu0 %v176
    %246 = vmatprep.subr.mxu0 0.0
    %247 = vmatpush1.msra.mxu0 %v177
    %248 = vmatprep.subr.mxu0 0.0
    %249 = vmatpush1.msra.mxu0 %v178
    %250 = vmatprep.mubr.f32.mxu0 %v146
    %251 = vmatmul.mubr.f32.gmra.mrb[0].mxu0 %v145
    %v252 = vpop.f32.mrb[0].mxu0
    %v253 = vadd.f32 %v184, %v252
    %v254 = vpop.f32.mrb[0].mxu0
    %255 = vdwg.mxu0
    %vm256 = vcmp.ge.f32.partialorder %v253, 0.0
    %v257 = vmul.f32 %v253, 0.1
    %v258 = vsel %vm256, %v253, %v257
    %v259 = vld [vmem:[%s7] sm:$0xff]
    %v260 = vld [vmem:[%s7 + $0x8] sm:$0xff]
    %v261 = vld [vmem:[%s7 + $0x10] sm:$0xff]
    %v262 = vld [vmem:[%s7 + $0x18] sm:$0xff]
    %v263 = vld [vmem:[%s8] sm:$0x1]
    %v265 = vlaneseq
    %v266 = vshrl.u32 %v265, 7
    %v267 = vsub.s32 0, %v266
    %v268 = vrot.slane %v263, %v267
    %vm270 = vcmask 261120
    %v272 = vsel %vm270, %v258, 0
    %274 = vmatprep.subr.mxu0 0.0
    %275 = vmatpush1.msra.mxu0 %v259
    %276 = vmatprep.subr.mxu0 0.0
    %277 = vmatpush1.msra.mxu0 %v260
    %278 = vmatprep.subr.mxu0 0.0
    %279 = vmatpush1.msra.mxu0 %v261
    %280 = vmatprep.subr.mxu0 0.0
    %281 = vmatpush1.msra.mxu0 %v262
    %282 = vmatprep.subr.mxu0 0.0
    %283 = vmatpush1.msra.mxu0 0.0
    %284 = vmatprep.subr.mxu0 0.0
    %285 = vmatpush1.msra.mxu0 0.0
    %286 = vmatprep.subr.mxu0 0.0
    %287 = vmatpush1.msra.mxu0 0.0
    %288 = vmatprep.subr.mxu0 0.0
    %289 = vmatpush1.msra.mxu0 0.0
    %290 = vmatprep.subr.mxu0 0.0
    %291 = vmatpush1.msra.mxu0 0.0
    %292 = vmatprep.subr.mxu0 0.0
    %293 = vmatpush1.msra.mxu0 0.0
    %294 = vmatprep.subr.mxu0 0.0
    %295 = vmatpush1.msra.mxu0 0.0
    %296 = vmatprep.subr.mxu0 0.0
    %297 = vmatpush1.msra.mxu0 0.0
    %298 = vmatprep.subr.mxu0 0.0
    %299 = vmatpush1.msra.mxu0 0.0
    %300 = vmatprep.subr.mxu0 0.0
    %301 = vmatpush1.msra.mxu0 0.0
    %302 = vmatprep.subr.mxu0 0.0
    %303 = vmatpush1.msra.mxu0 0.0
    %304 = vmatprep.subr.mxu0 0.0
    %305 = vmatpush1.msra.mxu0 0.0
    %306 = vmatprep.subr.mxu0 0.0
    %307 = vmatpush1.msra.mxu0 0.0
    %308 = vmatprep.subr.mxu0 0.0
    %309 = vmatpush1.msra.mxu0 0.0
    %310 = vmatprep.subr.mxu0 0.0
    %311 = vmatpush1.msra.mxu0 0.0
    %312 = vmatprep.subr.mxu0 0.0
    %313 = vmatpush1.msra.mxu0 0.0
    %314 = vmatprep.subr.mxu0 0.0
    %315 = vmatpush1.msra.mxu0 0.0
    %316 = vmatprep.subr.mxu0 0.0
    %317 = vmatpush1.msra.mxu0 0.0
    %318 = vmatprep.subr.mxu0 0.0
    %319 = vmatpush1.msra.mxu0 0.0
    %320 = vmatprep.subr.mxu0 0.0
    %321 = vmatpush1.msra.mxu0 0.0
    %322 = vmatprep.subr.mxu0 0.0
    %323 = vmatpush1.msra.mxu0 0.0
    %324 = vmatprep.subr.mxu0 0.0
    %325 = vmatpush1.msra.mxu0 0.0
    %326 = vmatprep.subr.mxu0 0.0
    %327 = vmatpush1.msra.mxu0 0.0
    %328 = vmatprep.subr.mxu0 0.0
    %329 = vmatpush1.msra.mxu0 0.0
    %330 = vmatprep.subr.mxu0 0.0
    %331 = vmatpush1.msra.mxu0 0.0
    %332 = vmatprep.subr.mxu0 0.0
    %333 = vmatpush1.msra.mxu0 0.0
    %334 = vmatprep.subr.mxu0 0.0
    %335 = vmatpush1.msra.mxu0 0.0
    %336 = vmatprep.subr.mxu0 0.0
    %337 = vmatpush1.msra.mxu0 0.0
    %338 = vmatprep.mubr.f32.mxu0 0.0
    %339 = vmatmul.mubr.f32.gmra.mrb[0].mxu0 %v272
    %v340 = vpop.f32.mrb[0].mxu0
    %v341 = vadd.f32 %v268, %v340
    %v342 = vpop.f32.mrb[0].mxu0
    %343 = vdwg.mxu0
    %vm344 = vcmask 9216
    %345 = vst.msk [vmem:[#allocation3] sm:$0x3] %vm344, %v341
    %s346 = sld [smem:[#allocation2]]
    %v347 = vstv %s346
    %v348 = vrcp.pop %v347
    %s349 = vtos %v348
    %v350 = vld [vmem:[%s1] sm:$0x3]
    %v351 = vadd.f32 %v341, %v350
    %v352 = vstv %s349
    %v353 = vmul.f32 %v351, %v352
    %v354 = vsel %vm344, %v353, -inf
    %355 = vmax.xlane.f32.xlu0 %v354
    %v356 = vpop.xlane.xlu0 %355
    %v357 = vlaneseq
    %v358 = vand.u32 %v357, 127
    %vm359 = vcmp.ge.f32.partialorder %v353, %v356
    %v360 = vsel %vm359, %v358, 2
    %v361 = vsel %vm344, %v360, 2147483647
    %v362 = vand.u32 %v361, 65535
    %v363 = vshra.s32 %v361, 16
    %v364 = vcvt.s32.f32 %v362
    %v365 = vcvt.s32.f32 %v363
    %366 = vmin.xlane.f32.xlu0 %v365
    %v367 = vpop.xlane.xlu0 %366
    %vm368 = vcmp.eq.f32.partialorder %v365, %v367
    %v369 = vsel %vm368, %v364, inf
    %370 = vmin.xlane.f32.xlu0 %v369
    %v371 = vpop.xlane.xlu0 %370
    %v372 = vcvt.f32.s32 %v371
    %v373 = vcvt.f32.s32 %v367
    %v374 = vshll.u32 %v373, 16
    %v375 = vadd.s32 %v374, %v372
    %vm376 = vcmp.eq.s32.totalorder %v358, %v375
    %v377 = vsel %vm376, 1, 0
    %v378 = vcvt.s32.f32 %v377
    %379 = vst.msk [vmem:[#allocation5] sm:$0x3] %vm344, %v378
    // Predicated region
    $region38: #{tpu_custom_call.1} parent=1 // pred_check
      _
    $region39: #{tpu_custom_call.1} parent=1 // pred_check_branch
      %381 = sbr.rel (0) target = $region41
    $region40: #{tpu_custom_call.1} parent=1 // pred_region
      %s383 = ssub.s32 32, 32
      %384 = vsyncadd [#allocation4], %s383
      %s386 = sshll.u32 [#allocation3], 4
      %s387 = int_to_ptr.vmem [resolvable:$true] %s386
      %389 = dma.vmem_to_hbm [thread:$0]  %s387, 32, %s9, [#allocation4]
    $region41: #{tpu_custom_call.1} parent=1 // pred_fallthru
      _
    // Predicated region
    $region42: #{tpu_custom_call.1} parent=1 // pred_check
      _
    $region43: #{tpu_custom_call.1} parent=1 // pred_check_branch
      %391 = sbr.rel (0) target = $region45
    $region44: #{tpu_custom_call.1} parent=1 // pred_region
      %s393 = ssub.s32 32, 32
      %394 = vsyncadd [#allocation6], %s393
      %s396 = sshll.u32 [#allocation5], 4
      %s397 = int_to_ptr.vmem [resolvable:$true] %s396
      %399 = dma.vmem_to_hbm [thread:$0]  %s397, 32, %s10, [#allocation6]
    $region45: #{tpu_custom_call.1} parent=1 // pred_fallthru
      _
    // Predicated region
    $region46: #{tpu_custom_call.1} parent=1 // pred_check
      _
    $region47: #{tpu_custom_call.1} parent=1 // pred_check_branch
      %401 = sbr.rel (0) target = $region49
    $region48: #{tpu_custom_call.1} parent=1 // pred_region
      %402 = dma.done [#allocation4], 32
    $region49: #{tpu_custom_call.1} parent=1 // pred_fallthru
      _
    // Predicated region
    $region50: #{tpu_custom_call.1} parent=1 // pred_check
      _
    $region51: #{tpu_custom_call.1} parent=1 // pred_check_branch
      %404 = sbr.rel (0) target = $region53
    $region52: #{tpu_custom_call.1} parent=1 // pred_region
      %405 = dma.done [#allocation6], 32
    $region53: #{tpu_custom_call.1} parent=1 // pred_fallthru
      _
    %406 = vsyncpa [#allocation4], 1
    %407 = vsyncpa [#allocation6], 1

</llo_original>
